<compile_context>
chip_gen: v7x
topology: tpu7x:2x2x1
jax: 0.10.0
libtpu: 0.0.40
codegen_flags: <defaults>
</compile_context>

<pallas_src>
import functools

import jax
import jax.numpy as jnp
import numpy as np
from jax.experimental import pallas as pl
from jax.experimental.pallas import tpu as pltpu

M_MARGIN = 0.25
GAMMA = 64.0
_NEG_BIG = -1e30  # finite "-inf" sentinel so the online-LSE rescale never sees exp(nan)


def _l2_normalize_kernel(x_ref, o_ref):
    x = x_ref[...].astype(jnp.float32)
    ss = jnp.sum(x * x, axis=-1, keepdims=True)
    # x / max(||x||, 1e-12)  ==  x * rsqrt(max(||x||^2, 1e-24))   (EUP rsqrt)
    o_ref[...] = x * jax.lax.rsqrt(jnp.maximum(ss, 1e-24))


def _circle_loss_kernel(featr_ref, featc_ref, labc_ref, labr_ref, out_ref,
                        m_p_ref, s_p_ref, m_n_ref, s_n_ref,
                        *, tile, margin, gamma):
    i = pl.program_id(0)
    j = pl.program_id(1)

    @pl.when(jnp.logical_and(i == 0, j == 0))
    def _init():
        m_p_ref[...] = jnp.full_like(m_p_ref, _NEG_BIG)
        s_p_ref[...] = jnp.zeros_like(s_p_ref)
        m_n_ref[...] = jnp.full_like(m_n_ref, _NEG_BIG)
        s_n_ref[...] = jnp.zeros_like(s_n_ref)

    # Square tiles => blocks with j < i lie entirely below the strict upper
    # triangle: skip all compute (their DMAs were remapped away in the specs).
    @pl.when(j >= i)
    def _compute():
        a = featr_ref[...]                     # (tile, D) f32, already normalized
        b = featc_ref[...]                     # (tile, D) f32
        # sim = a @ b.T without materializing a transpose: contract last dims.
        sim = jax.lax.dot_general(
            a, b, dimension_numbers=(((1,), (1,)), ((), ())),
            preferred_element_type=jnp.float32)          # (tile, tile)

        row = i * tile + jax.lax.broadcasted_iota(jnp.int32, (tile, tile), 0)
        col = j * tile + jax.lax.broadcasted_iota(jnp.int32, (tile, tile), 1)
        triu = row < col
        eq = labc_ref[...] == labr_ref[...]    # (tile,1) == (1,tile) -> (tile,tile)
        pos = jnp.logical_and(eq, triu)
        neg = jnp.logical_and(jnp.logical_not(eq), triu)

        mm = jnp.float32(margin)
        g = jnp.float32(gamma)
        ap = jnp.maximum(1.0 + mm - sim, 0.0)
        an = jnp.maximum(sim + mm, 0.0)
        logit_p = -ap * (sim - (1.0 - mm)) * g
        logit_n = an * (sim - mm) * g

        def update(mask, logit, m_ref, s_ref):
            # Online (running max, running sum-of-exp) logsumexp update.
            bm = jnp.max(jnp.where(mask, logit, _NEG_BIG))         # block max
            m_old = m_ref[...]                                     # (1, 1)
            m_new = jnp.maximum(m_old, bm)
            alpha = jnp.exp(m_old - m_new)                         # vector exp (EUP)
            bs = jnp.sum(jnp.where(mask, jnp.exp(logit - m_new), 0.0))
            s_ref[...] = s_ref[...] * alpha + bs
            m_ref[...] = m_new

        update(pos, logit_p, m_p_ref, s_p_ref)
        update(neg, logit_n, m_n_ref, s_n_ref)

    @pl.when(jnp.logical_and(i == pl.num_programs(0) - 1,
                             j == pl.num_programs(1) - 1))
    def _finalize():
        # If the batch has no positive (or negative) pairs, s == 0 -> lse = -inf
        # -> loss = softplus(-inf) = 0, matching the reference semantics.
        lse_p = m_p_ref[...] + jnp.log(s_p_ref[...])
        lse_n = m_n_ref[...] + jnp.log(s_n_ref[...])
        x = lse_p + lse_n
        out_ref[...] = jnp.logaddexp(jnp.zeros_like(x), x)   # stable softplus


def _pick_tile(n, requested=None):
    if requested is not None:
        tile = int(requested)
        if tile != n:
            assert tile % 128 == 0 and n % tile == 0, (
                "tile must be a multiple of 128 that divides N, or equal to N")
        return tile
    # Largest multiple of 128 dividing N, capped at 256 (safe on v5e/v6e/v7x).
    # On v6e with large N/D a cap of 512-1024 is also reasonable.
    cap = 256
    best = None
    t = 128
    while t <= min(cap, n):
        if n % t == 0:
            best = t
        t += 128
    return best if best is not None else n


def circle_loss(feat, label, *, m=M_MARGIN, gamma=GAMMA, tile=None):
    n, d = feat.shape
    tile = _pick_tile(n, tile)
    blocks = n // tile

    # Pass 1: row-wise L2 normalization (kept in f32 for the MXU contraction).
    normed = pl.pallas_call(
        _l2_normalize_kernel,
        out_shape=jax.ShapeDtypeStruct((n, d), jnp.float32),
        grid=(blocks,),
        in_specs=[pl.BlockSpec((tile, d), lambda i: (i, 0))],
        out_specs=pl.BlockSpec((tile, d), lambda i: (i, 0)),
        compiler_params=pltpu.CompilerParams(
            dimension_semantics=("parallel",)),
    )(feat)

    # Labels pre-laid-out in both orientations (avoids an in-kernel transpose).
    label_i32 = label.astype(jnp.int32)
    label_col = label_i32.reshape(n, 1)
    label_row = label_i32.reshape(1, n)

    # Rough VMEM budget: double-buffered (tile, d) operands + ~a dozen
    # (tile, tile) f32 temporaries; clamp so it also fits v7x's 64 MiB physical.
    est = 4 * (4 * tile * d + 12 * tile * tile) + (2 << 20)
    vmem_limit = int(min(max(est, 32 << 20), 48 << 20))

    kernel = functools.partial(_circle_loss_kernel,
                               tile=tile, margin=float(m), gamma=float(gamma))

    out = pl.pallas_call(
        kernel,
        out_shape=jax.ShapeDtypeStruct((1, 1), jnp.float32),
        grid=(blocks, blocks),
        in_specs=[
            # feat row block
            pl.BlockSpec((tile, d), lambda i, j: (i, 0)),
            # feat col block; j < i steps remapped to the diagonal block so the
            # pipeliner skips the (unused) DMA for fully lower-triangle blocks.
            pl.BlockSpec((tile, d), lambda i, j: (jnp.maximum(i, j), 0)),
            # label as column vector (rows of the block)
            pl.BlockSpec((tile, 1), lambda i, j: (i, 0)),
            # label as row vector (cols of the block), same remapping
            pl.BlockSpec((1, tile), lambda i, j: (0, jnp.maximum(i, j))),
        ],
        out_specs=pl.BlockSpec((1, 1), lambda i, j: (0, 0)),
        scratch_shapes=[
            pltpu.VMEM((1, 1), jnp.float32),   # running max, positives
            pltpu.VMEM((1, 1), jnp.float32),   # running sum, positives
            pltpu.VMEM((1, 1), jnp.float32),   # running max, negatives
            pltpu.VMEM((1, 1), jnp.float32),   # running sum, negatives
        ],
        compiler_params=pltpu.CompilerParams(
            dimension_semantics=("arbitrary", "arbitrary"),
            vmem_limit_bytes=vmem_limit),
    )(normed, normed, label_col, label_row)
    return out[0, 0]


def circle_loss_ref(feat, label):
    """Pure-JAX reference mirroring the PyTorch CircleLoss module."""
    feat = feat.astype(jnp.float32)
    norm = jnp.sqrt(jnp.sum(feat * feat, axis=-1, keepdims=True))
    normed = feat / jnp.maximum(norm, 1e-12)
    sim = normed @ normed.T
    n = feat.shape[0]
    row = jnp.arange(n)[:, None]
    col = jnp.arange(n)[None, :]
    triu = row < col
    label_eq = label[:, None] == label[None, :]
    pos_mask = label_eq & triu
    neg_mask = (~label_eq) & triu
    m, gamma = M_MARGIN, GAMMA
    ap = jnp.maximum(-sim + 1.0 + m, 0.0)
    an = jnp.maximum(sim + m, 0.0)
    logit_p = -ap * (sim - (1.0 - m)) * gamma
    logit_n = an * (sim - m) * gamma
    lse_p = jax.scipy.special.logsumexp(jnp.where(pos_mask, logit_p, -jnp.inf))
    lse_n = jax.scipy.special.logsumexp(jnp.where(neg_mask, logit_n, -jnp.inf))
    return jax.nn.softplus(lse_n + lse_p)


if __name__ == "__main__":
    key = jax.random.PRNGKey(0)

    def check(n, d, n_classes, tile=None):
        k1, k2 = jax.random.split(jax.random.fold_in(key, n))
        feat = jax.random.normal(k1, (n, d), dtype=jnp.float32)
        label = jax.random.randint(k2, (n,), 0, n_classes, dtype=jnp.int32)
        loss = circle_loss(feat, label, tile=tile)
        jax.block_until_ready(loss)
        ref = circle_loss_ref(feat, label)
        np.testing.assert_allclose(np.asarray(loss), np.asarray(ref),
                                   rtol=2e-5, atol=2e-5)

    # Small single-block case (tile == N), the shape regime of the spec.
    check(24, 32, 3)
    # Tiled case: 2x2 grid of 128-wide blocks, exercising the streamed online
    # logsumexp, the lower-triangle block skip, and the DMA remapping.
    check(256, 64, 8, tile=128)

    print("KERNEL_OK")
</pallas_src>

<mosaic_0001>
module attributes {stable_mosaic.version = 11 : i64} {
  func.func @_l2_normalize_kernel(%arg0: i32, %arg1: memref<24x32xf32, #tpu.memory_space<vmem>>, %arg2: memref<24x32xf32, #tpu.memory_space<vmem>>) attributes {dimension_semantics = [#tpu.dimension_semantics<parallel>], iteration_bounds = array<i64: 1>, scalar_prefetch = 0 : i64, scratch_operands = 0 : i64, tpu.core_type = #tpu.core_type<tc>, window_params = [{transform_indices = @transform_0, window_bounds = array<i64: 24, 32>}, {transform_indices = @transform_1, window_bounds = array<i64: 24, 32>}]} {
    %c0 = arith.constant 0 : index
    %c0_0 = arith.constant 0 : index
    %0 = vector.load %arg1[%c0, %c0_0] : memref<24x32xf32, #tpu.memory_space<vmem>>, vector<24x32xf32>
    %1 = arith.mulf %0, %0 : vector<24x32xf32>
    %cst = arith.constant dense<0.000000e+00> : vector<24xf32>
    %2 = vector.multi_reduction <add>, %1, %cst [1] : vector<24x32xf32> to vector<24xf32>
    %3 = vector.shape_cast %2 : vector<24xf32> to vector<24x1xf32>
    %cst_1 = arith.constant 1.000000e-24 : f32
    %4 = vector.broadcast %cst_1 : f32 to vector<24x1xf32>
    %5 = arith.maximumf %3, %4 : vector<24x1xf32>
    %6 = math.rsqrt %5 : vector<24x1xf32>
    %7 = vector.broadcast %6 : vector<24x1xf32> to vector<24x32xf32>
    %8 = arith.mulf %0, %7 : vector<24x32xf32>
    %c0_2 = arith.constant 0 : index
    %c0_3 = arith.constant 0 : index
    %9 = vector.load %arg2[%c0_2, %c0_3] : memref<24x32xf32, #tpu.memory_space<vmem>>, vector<24x32xf32>
    tpu.vector_store %arg2[%c0_2, %c0_3], %8 {strides = array<i32>} : memref<24x32xf32, #tpu.memory_space<vmem>>, vector<24x32xf32>,
    return
  }
  func.func @transform_0(%arg0: i32) -> (i32, i32) {
    %c0_i32 = arith.constant 0 : i32
    %c0_i32_0 = arith.constant 0 : i32
    return %arg0, %c0_i32 : i32, i32
  }
  func.func @transform_1(%arg0: i32) -> (i32, i32) {
    %c0_i32 = arith.constant 0 : i32
    %c0_i32_0 = arith.constant 0 : i32
    return %arg0, %c0_i32 : i32, i32
  }
}

</mosaic_0001>

<llo_original>
// kernel: tpu_custom_call.1
$region0: #{tpu_custom_call.1}
  #allocation0 [shape = 'u32[]', space=smem, size = 0x4, offset = 0x4, fixed_abs, tag = 'smem constant byte address 0x4 - core index']
  #allocation1 [shape = 'u32[144,128]{1,0:T(1,128)}', space=vmem, size = 0x12000, scoped, tag = 'internal scratch']
  %s0 = inlined_call_operand.hbm [shape: f32[24,32], index: 0, kind: input, shape index: {}]
  %s1 = inlined_call_operand.hbm [shape: f32[24,32], index: 1, kind: output, shape index: {}]
  %s2 = sld [smem:[#allocation0]]
  $region18: #{tpu_custom_call.1} parent=0
    _
  %s4 = ssub.s32 1, %s2
  %s5 = scalar_select 0, %s4, %s2
  $region1: #{tpu_custom_call.1} parent=0
    #allocation2 [shape = 'u8[12288]{0}', space=vmem, size = 0x3000, scoped, tag = 'input window, operand 0, single buffered']
    #allocation3 [shape = 's32[1]{0}', space=sflag, size = 0x4, scoped, tag = 'scoped memory for tpu_custom_call.1']
    #allocation4 [shape = 's32[1]{0}', space=sflag, size = 0x4, scoped, tag = 'scoped memory for tpu_custom_call.1']
    #allocation5 [shape = 'u8[12288]{0}', space=vmem, size = 0x3000, scoped, tag = 'output window, operand 0, single buffered']
    %6 = vsyncpa [#allocation3], 0
    %7 = vsyncpa [#allocation4], 0
    // Predicated region
    $region2: #{tpu_custom_call.1} parent=1 // pred_check
      _
    $region3: #{tpu_custom_call.1} parent=1 // pred_check_branch
      %9 = sbr.rel (0) target = $region5
    $region4: #{tpu_custom_call.1} parent=1 // pred_region
      %s11 = ssub.s32 384, 384
      %12 = vsyncadd [#allocation3], %s11
      %s13 = sshll.u32 [#allocation2], 4
      %s14 = int_to_ptr.vmem [resolvable:$true] %s13
      %19 = dma.hbm_to_vmem [thread:$0]  %s0, 384, %s14, [#allocation3], 128, 128, 8
    $region5: #{tpu_custom_call.1} parent=1 // pred_fallthru
      _
    // Predicated region
    $region6: #{tpu_custom_call.1} parent=1 // pred_check
      _
    $region7: #{tpu_custom_call.1} parent=1 // pred_check_branch
      %21 = sbr.rel (0) target = $region9
    $region8: #{tpu_custom_call.1} parent=1 // pred_region
      %22 = dma.done [#allocation3], 384
    $region9: #{tpu_custom_call.1} parent=1 // pred_fallthru
      _
    %v23 = vld [vmem:[#allocation2] sm:$0xff]
    %v24 = vld [vmem:[#allocation2 + $0x8] sm:$0xff]
    %v25 = vld [vmem:[#allocation2 + $0x10] sm:$0xff]
    %v26 = vmul.f32 %v23, %v23
    %v27 = vmul.f32 %v24, %v24
    %v28 = vmul.f32 %v25, %v25
    %vm29 = vcmask 261120
    %v30 = vsel %vm29, %v26, 0.0
    %31 = vadd.xlane.f32.xlu0 %v30
    %v32 = vpop.xlane.xlu0 %31
    %v33 = vsel %vm29, %v27, 0.0
    %34 = vadd.xlane.f32.xlu0 %v33
    %v35 = vpop.xlane.xlu0 %34
    %v36 = vsel %vm29, %v28, 0.0
    %37 = vadd.xlane.f32.xlu0 %v36
    %v38 = vpop.xlane.xlu0 %37
    %v39 = vmax.f32 %v32, 1e-24
    %v40 = vmax.f32 %v35, 1e-24
    %v41 = vmax.f32 %v38, 1e-24
    %v42 = vrsqrt.pop %v39
    %v43 = vrsqrt.pop %v40
    %v44 = vrsqrt.pop %v41
    %v45 = vmul.f32 %v23, %v42
    %v46 = vmul.f32 %v24, %v43
    %v47 = vmul.f32 %v25, %v44
    %48 = vst.msk [vmem:[#allocation5] sm:$0xff] %vm29, %v45
    %49 = vst.msk [vmem:[#allocation5 + $0x8] sm:$0xff] %vm29, %v46
    %50 = vst.msk [vmem:[#allocation5 + $0x10] sm:$0xff] %vm29, %v47
    // Predicated region
    $region10: #{tpu_custom_call.1} parent=1 // pred_check
      _
    $region11: #{tpu_custom_call.1} parent=1 // pred_check_branch
      %52 = sbr.rel (0) target = $region13
    $region12: #{tpu_custom_call.1} parent=1 // pred_region
      %s54 = ssub.s32 384, 384
      %55 = vsyncadd [#allocation4], %s54
      %s56 = sshll.u32 [#allocation5], 4
      %s57 = int_to_ptr.vmem [resolvable:$true] %s56
      %62 = dma.vmem_to_hbm [thread:$0]  %s57, 384, %s1, [#allocation4], 128, 128, 8
    $region13: #{tpu_custom_call.1} parent=1 // pred_fallthru
      _
    // Predicated region
    $region14: #{tpu_custom_call.1} parent=1 // pred_check
      _
    $region15: #{tpu_custom_call.1} parent=1 // pred_check_branch
      %64 = sbr.rel (0) target = $region17
    $region16: #{tpu_custom_call.1} parent=1 // pred_region
      %65 = dma.done [#allocation4], 384
    $region17: #{tpu_custom_call.1} parent=1 // pred_fallthru
      _
    %66 = vsyncpa [#allocation3], 1
    %67 = vsyncpa [#allocation4], 1

</llo_original>
